<compile_context>
chip_gen: v7x
topology: tpu7x:2x2x1
jax: 0.10.0
libtpu: 0.0.40
codegen_flags: <defaults>
</compile_context>

<pallas_src>
import math
from functools import partial

import jax
import jax.numpy as jnp
from jax import lax
from jax.experimental import pallas as pl
from jax.experimental.pallas import tpu as pltpu


# ----------------------------------------------------------------------------
# Pallas kernel: fused (1x1 conv + BN + ReLU) -> (3x3 depthwise + BN + ReLU)
#                -> residual channel concat, all in a (C, H*W) lane-dense layout.
# One grid step = one batch element.
# ----------------------------------------------------------------------------
def _res_ghost_kernel(x_ref, w1_ref, s1_ref, b1_ref, wdw_ref, s2_ref, b2_ref,
                      out_ref, *, W):
    Cin, HW = x_ref.shape            # (4, 256)
    Cinit = w1_ref.shape[0]          # 6
    Cnew = wdw_ref.shape[0]          # 6
    Cout = out_ref.shape[0]          # 16

    x = x_ref[...]                   # (Cin, HW)  lane-dense
    w1 = w1_ref[...]                 # (Cinit, Cin)

    # ---- primary_conv: 1x1 conv as Cin broadcast-FMAs on the VPU ------------
    acc1 = w1[:, 0:1] * x[0:1, :]
    for ci in range(1, Cin):
        acc1 = acc1 + w1[:, ci:ci + 1] * x[ci:ci + 1, :]
    # folded BatchNorm (eval) + ReLU
    x1 = jnp.maximum(acc1 * s1_ref[...] + b1_ref[...], 0.0)      # (Cinit, HW)

    # ---- cheap_operation: depthwise 3x3, padding=1, stride=1 ----------------
    # Flat zero pad of W+1 on each side covers every tap offset dh*W+dw; the only
    # residual wrap-around errors are at the left/right image columns, fixed by
    # two lane-index masks.  No VMEM scratch, no full-buffer zero-fill.
    zpad = jnp.zeros((Cinit, W + 1), jnp.float32)
    xp = jnp.concatenate([zpad, x1, zpad], axis=1)               # (Cinit, HW+2W+2)

    col = lax.broadcasted_iota(jnp.int32, (1, HW), 1) % W
    mask_l = (col > 0).astype(jnp.float32)        # source column w-1 is valid
    mask_r = (col < (W - 1)).astype(jnp.float32)  # source column w+1 is valid

    wdw = wdw_ref[...]               # (Cnew, 9), tap order k = (dh+1)*3 + (dw+1)
    acc2 = jnp.zeros((Cnew, HW), jnp.float32)
    k = 0
    for dh in (-1, 0, 1):
        for dw in (-1, 0, 1):
            off = (W + 1) + dh * W + dw
            s = xp[:, off:off + HW]               # static lane-offset slice (XLU shift)
            if dw == -1:
                s = s * mask_l
            elif dw == 1:
                s = s * mask_r
            acc2 = acc2 + s * wdw[:, k:k + 1]     # per-channel tap, lane-broadcast
            k += 1
    x2 = jnp.maximum(acc2 * s2_ref[...] + b2_ref[...], 0.0)      # (Cnew, HW)

    # ---- residual concat as direct slab writes (Cin+Cinit+Cnew == oup here) -
    out_ref[0:Cin, :] = x
    out_ref[Cin:Cin + Cinit, :] = x1
    out_ref[Cin + Cinit:Cout, :] = x2[:Cout - (Cin + Cinit), :]


def res_ghost_forward_nchw(x_nchw, params, oup):
    """PyTorch-facing wrapper: NCHW in, NCHW out (only reshapes, no transposes)."""
    w1, s1, b1, wdw, s2, b2 = params
    N, Cin, H, W = x_nchw.shape
    HW = H * W
    Cinit = w1.shape[0]
    Cnew = wdw.shape[0]
    assert Cin + Cinit <= oup <= Cin + Cinit + Cnew

    x_flat = x_nchw.reshape(N, Cin, HW)

    out_flat = pl.pallas_call(
        partial(_res_ghost_kernel, W=W),
        out_shape=jax.ShapeDtypeStruct((N, oup, HW), jnp.float32),
        grid=(N,),
        in_specs=[
            pl.BlockSpec((None, Cin, HW), lambda n: (n, 0, 0)),
            pl.BlockSpec((Cinit, Cin), lambda n: (0, 0)),
            pl.BlockSpec((Cinit, 1), lambda n: (0, 0)),
            pl.BlockSpec((Cinit, 1), lambda n: (0, 0)),
            pl.BlockSpec((Cnew, 9), lambda n: (0, 0)),
            pl.BlockSpec((Cnew, 1), lambda n: (0, 0)),
            pl.BlockSpec((Cnew, 1), lambda n: (0, 0)),
        ],
        out_specs=pl.BlockSpec((None, oup, HW), lambda n: (n, 0, 0)),
        compiler_params=pltpu.CompilerParams(
            dimension_semantics=("parallel",)),
    )(x_flat, w1, s1, b1, wdw, s2, b2)

    return out_flat.reshape(N, oup, H, W)


# ----------------------------------------------------------------------------
# Parameter construction (deterministic, synthetic) + BN folding.
# ----------------------------------------------------------------------------
def make_params(key, inp, oup, ratio):
    ratio_g = ratio - 1
    oup_g = oup - inp
    c_init = math.ceil(oup_g / ratio_g)
    c_new = c_init * (ratio_g - 1)
    assert c_new == c_init, "kernel assumes pure depthwise cheap_operation (ratio_g == 2)"

    ks = jax.random.split(key, 8)
    eps = 1e-5

    # primary_conv: 1x1 conv weight (PyTorch (c_init, inp, 1, 1)) -> (c_init, inp)
    w1 = jax.random.normal(ks[0], (c_init, inp), jnp.float32) * 0.3
    g1 = 1.0 + 0.1 * jax.random.normal(ks[1], (c_init,), jnp.float32)
    beta1 = 0.1 * jax.random.normal(ks[2], (c_init,), jnp.float32)
    mean1 = 0.05 * jax.random.normal(ks[3], (c_init,), jnp.float32)
    var1 = jnp.abs(1.0 + 0.1 * jax.random.normal(ks[4], (c_init,), jnp.float32))
    scale1 = g1 / jnp.sqrt(var1 + eps)
    bias1 = beta1 - mean1 * scale1

    # cheap_operation: depthwise 3x3 weight (PyTorch (c_new, 1, 3, 3)) -> (c_new, 9)
    w_dw = jax.random.normal(ks[5], (c_new, 1, 3, 3), jnp.float32) * 0.3
    w_dw = w_dw[:, 0].reshape(c_new, 9)
    g2 = 1.0 + 0.1 * jax.random.normal(ks[6], (c_new,), jnp.float32)
    beta2 = 0.1 * jax.random.normal(ks[7], (c_new,), jnp.float32)
    mean2 = jnp.zeros((c_new,), jnp.float32)
    var2 = jnp.ones((c_new,), jnp.float32)
    scale2 = g2 / jnp.sqrt(var2 + eps)
    bias2 = beta2 - mean2 * scale2

    params = (
        w1,
        scale1.reshape(c_init, 1), bias1.reshape(c_init, 1),
        w_dw,
        scale2.reshape(c_new, 1), bias2.reshape(c_new, 1),
    )
    return params, c_init, c_new


# ----------------------------------------------------------------------------
# Pure-JAX reference (same math, lax.conv) for a correctness check.
# ----------------------------------------------------------------------------
def reference_nchw(x_nchw, params, oup):
    w1, s1, b1, wdw, s2, b2 = params
    N, Cin, H, W = x_nchw.shape
    Cinit = w1.shape[0]
    Cnew = wdw.shape[0]

    x = jnp.transpose(x_nchw, (0, 2, 3, 1))                     # NHWC
    w1_hwio = jnp.transpose(w1, (1, 0)).reshape(1, 1, Cin, Cinit)
    y1 = lax.conv_general_dilated(x, w1_hwio, (1, 1), "SAME",
                                  dimension_numbers=("NHWC", "HWIO", "NHWC"))
    x1 = jnp.maximum(y1 * s1.reshape(1, 1, 1, -1) + b1.reshape(1, 1, 1, -1), 0.0)

    wdw_hwio = jnp.transpose(wdw.reshape(Cnew, 3, 3), (1, 2, 0)).reshape(3, 3, 1, Cnew)
    y2 = lax.conv_general_dilated(x1, wdw_hwio, (1, 1), "SAME",
                                  dimension_numbers=("NHWC", "HWIO", "NHWC"),
                                  feature_group_count=Cinit)
    x2 = jnp.maximum(y2 * s2.reshape(1, 1, 1, -1) + b2.reshape(1, 1, 1, -1), 0.0)

    out = jnp.concatenate([x, x1, x2], axis=-1)[:, :, :, :oup]
    return jnp.transpose(out, (0, 3, 1, 2))                     # back to NCHW


# ----------------------------------------------------------------------------
if __name__ == "__main__":
    # ResGhostModule(inp=4, oup=16, kernel_size=1, ratio=3, dw_size=3, stride=1)
    inp, oup, ratio = 4, 16, 3
    N, H, W = 2, 16, 16

    key = jax.random.PRNGKey(0)
    kx, kp = jax.random.split(key)
    x = jax.random.normal(kx, (N, inp, H, W), jnp.float32)      # NCHW like PyTorch

    params, c_init, c_new = make_params(kp, inp, oup, ratio)

    fwd = jax.jit(partial(res_ghost_forward_nchw, oup=oup))
    out = jax.block_until_ready(fwd(x, params))

    ref = reference_nchw(x, params, oup)
    assert out.shape == (N, oup, H, W), out.shape
    assert jnp.allclose(out, ref, atol=1e-4, rtol=1e-4), \
        float(jnp.max(jnp.abs(out - ref)))

    print("KERNEL_OK")
</pallas_src>

<mosaic_0001>
module attributes {stable_mosaic.version = 11 : i64} {
  func.func @_res_ghost_kernel(%arg0: i32, %arg1: memref<1x4x256xf32, #tpu.memory_space<vmem>>, %arg2: memref<6x4xf32, #tpu.memory_space<vmem>>, %arg3: memref<6x1xf32, #tpu.memory_space<vmem>>, %arg4: memref<6x1xf32, #tpu.memory_space<vmem>>, %arg5: memref<6x9xf32, #tpu.memory_space<vmem>>, %arg6: memref<6x1xf32, #tpu.memory_space<vmem>>, %arg7: memref<6x1xf32, #tpu.memory_space<vmem>>, %arg8: memref<1x16x256xf32, #tpu.memory_space<vmem>>) attributes {dimension_semantics = [#tpu.dimension_semantics<parallel>], iteration_bounds = array<i64: 2>, scalar_prefetch = 0 : i64, scratch_operands = 0 : i64, tpu.core_type = #tpu.core_type<tc>, window_params = [{transform_indices = @transform_0, window_bounds = array<i64: 1, 4, 256>}, {pipeline_mode = #tpu.pipeline_mode<synchronous>, transform_indices = @transform_1, window_bounds = array<i64: 6, 4>}, {pipeline_mode = #tpu.pipeline_mode<synchronous>, transform_indices = @transform_2, window_bounds = array<i64: 6, 1>}, {pipeline_mode = #tpu.pipeline_mode<synchronous>, transform_indices = @transform_3, window_bounds = array<i64: 6, 1>}, {pipeline_mode = #tpu.pipeline_mode<synchronous>, transform_indices = @transform_4, window_bounds = array<i64: 6, 9>}, {pipeline_mode = #tpu.pipeline_mode<synchronous>, transform_indices = @transform_5, window_bounds = array<i64: 6, 1>}, {pipeline_mode = #tpu.pipeline_mode<synchronous>, transform_indices = @transform_6, window_bounds = array<i64: 6, 1>}, {transform_indices = @transform_7, window_bounds = array<i64: 1, 16, 256>}]} {
    %c0 = arith.constant 0 : index
    %c0_0 = arith.constant 0 : index
    %c0_1 = arith.constant 0 : index
    %0 = vector.load %arg1[%c0, %c0_0, %c0_1] : memref<1x4x256xf32, #tpu.memory_space<vmem>>, vector<1x4x256xf32>
    %1 = vector.shape_cast %0 : vector<1x4x256xf32> to vector<4x256xf32>
    %c0_2 = arith.constant 0 : index
    %c0_3 = arith.constant 0 : index
    %2 = vector.load %arg2[%c0_2, %c0_3] : memref<6x4xf32, #tpu.memory_space<vmem>>, vector<6x4xf32>
    %3 = vector.extract_strided_slice %2 {offsets = [0, 0], sizes = [6, 1], strides = [1, 1]} : vector<6x4xf32> to vector<6x1xf32>
    %4 = vector.extract_strided_slice %1 {offsets = [0, 0], sizes = [1, 256], strides = [1, 1]} : vector<4x256xf32> to vector<1x256xf32>
    %5 = vector.broadcast %3 : vector<6x1xf32> to vector<6x256xf32>
    %6 = vector.broadcast %4 : vector<1x256xf32> to vector<6x256xf32>
    %7 = arith.mulf %5, %6 : vector<6x256xf32>
    %8 = vector.extract_strided_slice %2 {offsets = [0, 1], sizes = [6, 1], strides = [1, 1]} : vector<6x4xf32> to vector<6x1xf32>
    %9 = vector.extract_strided_slice %1 {offsets = [1, 0], sizes = [1, 256], strides = [1, 1]} : vector<4x256xf32> to vector<1x256xf32>
    %10 = vector.broadcast %8 : vector<6x1xf32> to vector<6x256xf32>
    %11 = vector.broadcast %9 : vector<1x256xf32> to vector<6x256xf32>
    %12 = arith.mulf %10, %11 : vector<6x256xf32>
    %13 = arith.addf %7, %12 : vector<6x256xf32>
    %14 = vector.extract_strided_slice %2 {offsets = [0, 2], sizes = [6, 1], strides = [1, 1]} : vector<6x4xf32> to vector<6x1xf32>
    %15 = vector.extract_strided_slice %1 {offsets = [2, 0], sizes = [1, 256], strides = [1, 1]} : vector<4x256xf32> to vector<1x256xf32>
    %16 = vector.broadcast %14 : vector<6x1xf32> to vector<6x256xf32>
    %17 = vector.broadcast %15 : vector<1x256xf32> to vector<6x256xf32>
    %18 = arith.mulf %16, %17 : vector<6x256xf32>
    %19 = arith.addf %13, %18 : vector<6x256xf32>
    %20 = vector.extract_strided_slice %2 {offsets = [0, 3], sizes = [6, 1], strides = [1, 1]} : vector<6x4xf32> to vector<6x1xf32>
    %21 = vector.extract_strided_slice %1 {offsets = [3, 0], sizes = [1, 256], strides = [1, 1]} : vector<4x256xf32> to vector<1x256xf32>
    %22 = vector.broadcast %20 : vector<6x1xf32> to vector<6x256xf32>
    %23 = vector.broadcast %21 : vector<1x256xf32> to vector<6x256xf32>
    %24 = arith.mulf %22, %23 : vector<6x256xf32>
    %25 = arith.addf %19, %24 : vector<6x256xf32>
    %c0_4 = arith.constant 0 : index
    %c0_5 = arith.constant 0 : index
    %26 = vector.load %arg3[%c0_4, %c0_5] : memref<6x1xf32, #tpu.memory_space<vmem>>, vector<6x1xf32>
    %27 = vector.broadcast %26 : vector<6x1xf32> to vector<6x256xf32>
    %28 = arith.mulf %25, %27 : vector<6x256xf32>
    %c0_6 = arith.constant 0 : index
    %c0_7 = arith.constant 0 : index
    %29 = vector.load %arg4[%c0_6, %c0_7] : memref<6x1xf32, #tpu.memory_space<vmem>>, vector<6x1xf32>
    %30 = vector.broadcast %29 : vector<6x1xf32> to vector<6x256xf32>
    %31 = arith.addf %28, %30 : vector<6x256xf32>
    %cst = arith.constant 0.000000e+00 : f32
    %32 = vector.broadcast %cst : f32 to vector<6x256xf32>
    %33 = arith.maximumf %31, %32 : vector<6x256xf32>
    %cst_8 = arith.constant 0.000000e+00 : f32
    %34 = vector.broadcast %cst_8 : f32 to vector<6x17xf32>
    %35 = tpu.concatenate %34, %33, %34 in 1 : vector<6x17xf32>, vector<6x256xf32>, vector<6x17xf32> -> vector<6x290xf32>
    %36 = tpu.iota {dimensions = array<i32: 1>} : vector<1x256xi32>
    %c16_i32 = arith.constant 16 : i32
    %c0_i32 = arith.constant 0 : i32
    %37 = arith.cmpi eq, %c16_i32, %c0_i32 : i32
    %c1_i32 = arith.constant 1 : i32
    %38 = arith.select %37, %c1_i32, %c16_i32 : i32
    %39 = vector.broadcast %38 : i32 to vector<1x256xi32>
    %40 = arith.remsi %36, %39 : vector<1x256xi32>
    %c0_i32_9 = arith.constant 0 : i32
    %41 = vector.broadcast %c0_i32_9 : i32 to vector<1x256xi32>
    %42 = arith.cmpi ne, %40, %41 : vector<1x256xi32>
    %c0_i32_10 = arith.constant 0 : i32
    %43 = vector.broadcast %c0_i32_10 : i32 to vector<1x256xi32>
    %44 = arith.cmpi slt, %40, %43 : vector<1x256xi32>
    %c0_i32_11 = arith.constant 0 : i32
    %45 = arith.cmpi slt, %38, %c0_i32_11 : i32
    %46 = vector.broadcast %45 : i1 to vector<1x256xi1>
    %47 = vector.broadcast %46 : vector<1x256xi1> to vector<1x256xi1>
    %48 = arith.xori %44, %47 : vector<1x256xi1>
    %49 = arith.andi %48, %42 : vector<1x256xi1>
    %50 = vector.broadcast %38 : i32 to vector<1x256xi32>
    %51 = arith.addi %40, %50 : vector<1x256xi32>
    %52 = arith.select %49, %51, %40 : vector<1x256xi1>, vector<1x256xi32>
    %c0_i32_12 = arith.constant 0 : i32
    %53 = vector.broadcast %c0_i32_12 : i32 to vector<1x256xi32>
    %54 = arith.cmpi sgt, %52, %53 : vector<1x256xi32>
    %55 = arith.extui %54 : vector<1x256xi1> to vector<1x256xi32>
    %56 = arith.sitofp %55 : vector<1x256xi32> to vector<1x256xf32>
    %c15_i32 = arith.constant 15 : i32
    %57 = vector.broadcast %c15_i32 : i32 to vector<1x256xi32>
    %58 = arith.cmpi slt, %52, %57 : vector<1x256xi32>
    %59 = arith.extui %58 : vector<1x256xi1> to vector<1x256xi32>
    %60 = arith.sitofp %59 : vector<1x256xi32> to vector<1x256xf32>
    %c0_13 = arith.constant 0 : index
    %c0_14 = arith.constant 0 : index
    %61 = vector.load %arg5[%c0_13, %c0_14] : memref<6x9xf32, #tpu.memory_space<vmem>>, vector<6x9xf32>
    %cst_15 = arith.constant 0.000000e+00 : f32
    %62 = vector.broadcast %cst_15 : f32 to vector<6x256xf32>
    %63 = vector.extract_strided_slice %35 {offsets = [0, 0], sizes = [6, 256], strides = [1, 1]} : vector<6x290xf32> to vector<6x256xf32>
    %64 = vector.broadcast %56 : vector<1x256xf32> to vector<6x256xf32>
    %65 = arith.mulf %63, %64 : vector<6x256xf32>
    %66 = vector.extract_strided_slice %61 {offsets = [0, 0], sizes = [6, 1], strides = [1, 1]} : vector<6x9xf32> to vector<6x1xf32>
    %67 = vector.broadcast %66 : vector<6x1xf32> to vector<6x256xf32>
    %68 = arith.mulf %65, %67 : vector<6x256xf32>
    %69 = arith.addf %62, %68 : vector<6x256xf32>
    %70 = vector.extract_strided_slice %35 {offsets = [0, 1], sizes = [6, 256], strides = [1, 1]} : vector<6x290xf32> to vector<6x256xf32>
    %71 = vector.extract_strided_slice %61 {offsets = [0, 1], sizes = [6, 1], strides = [1, 1]} : vector<6x9xf32> to vector<6x1xf32>
    %72 = vector.broadcast %71 : vector<6x1xf32> to vector<6x256xf32>
    %73 = arith.mulf %70, %72 : vector<6x256xf32>
    %74 = arith.addf %69, %73 : vector<6x256xf32>
    %75 = vector.extract_strided_slice %35 {offsets = [0, 2], sizes = [6, 256], strides = [1, 1]} : vector<6x290xf32> to vector<6x256xf32>
    %76 = vector.broadcast %60 : vector<1x256xf32> to vector<6x256xf32>
    %77 = arith.mulf %75, %76 : vector<6x256xf32>
    %78 = vector.extract_strided_slice %61 {offsets = [0, 2], sizes = [6, 1], strides = [1, 1]} : vector<6x9xf32> to vector<6x1xf32>
    %79 = vector.broadcast %78 : vector<6x1xf32> to vector<6x256xf32>
    %80 = arith.mulf %77, %79 : vector<6x256xf32>
    %81 = arith.addf %74, %80 : vector<6x256xf32>
    %82 = vector.extract_strided_slice %35 {offsets = [0, 16], sizes = [6, 256], strides = [1, 1]} : vector<6x290xf32> to vector<6x256xf32>
    %83 = vector.broadcast %56 : vector<1x256xf32> to vector<6x256xf32>
    %84 = arith.mulf %82, %83 : vector<6x256xf32>
    %85 = vector.extract_strided_slice %61 {offsets = [0, 3], sizes = [6, 1], strides = [1, 1]} : vector<6x9xf32> to vector<6x1xf32>
    %86 = vector.broadcast %85 : vector<6x1xf32> to vector<6x256xf32>
    %87 = arith.mulf %84, %86 : vector<6x256xf32>
    %88 = arith.addf %81, %87 : vector<6x256xf32>
    %89 = vector.extract_strided_slice %35 {offsets = [0, 17], sizes = [6, 256], strides = [1, 1]} : vector<6x290xf32> to vector<6x256xf32>
    %90 = vector.extract_strided_slice %61 {offsets = [0, 4], sizes = [6, 1], strides = [1, 1]} : vector<6x9xf32> to vector<6x1xf32>
    %91 = vector.broadcast %90 : vector<6x1xf32> to vector<6x256xf32>
    %92 = arith.mulf %89, %91 : vector<6x256xf32>
    %93 = arith.addf %88, %92 : vector<6x256xf32>
    %94 = vector.extract_strided_slice %35 {offsets = [0, 18], sizes = [6, 256], strides = [1, 1]} : vector<6x290xf32> to vector<6x256xf32>
    %95 = vector.broadcast %60 : vector<1x256xf32> to vector<6x256xf32>
    %96 = arith.mulf %94, %95 : vector<6x256xf32>
    %97 = vector.extract_strided_slice %61 {offsets = [0, 5], sizes = [6, 1], strides = [1, 1]} : vector<6x9xf32> to vector<6x1xf32>
    %98 = vector.broadcast %97 : vector<6x1xf32> to vector<6x256xf32>
    %99 = arith.mulf %96, %98 : vector<6x256xf32>
    %100 = arith.addf %93, %99 : vector<6x256xf32>
    %101 = vector.extract_strided_slice %35 {offsets = [0, 32], sizes = [6, 256], strides = [1, 1]} : vector<6x290xf32> to vector<6x256xf32>
    %102 = vector.broadcast %56 : vector<1x256xf32> to vector<6x256xf32>
    %103 = arith.mulf %101, %102 : vector<6x256xf32>
    %104 = vector.extract_strided_slice %61 {offsets = [0, 6], sizes = [6, 1], strides = [1, 1]} : vector<6x9xf32> to vector<6x1xf32>
    %105 = vector.broadcast %104 : vector<6x1xf32> to vector<6x256xf32>
    %106 = arith.mulf %103, %105 : vector<6x256xf32>
    %107 = arith.addf %100, %106 : vector<6x256xf32>
    %108 = vector.extract_strided_slice %35 {offsets = [0, 33], sizes = [6, 256], strides = [1, 1]} : vector<6x290xf32> to vector<6x256xf32>
    %109 = vector.extract_strided_slice %61 {offsets = [0, 7], sizes = [6, 1], strides = [1, 1]} : vector<6x9xf32> to vector<6x1xf32>
    %110 = vector.broadcast %109 : vector<6x1xf32> to vector<6x256xf32>
    %111 = arith.mulf %108, %110 : vector<6x256xf32>
    %112 = arith.addf %107, %111 : vector<6x256xf32>
    %113 = vector.extract_strided_slice %35 {offsets = [0, 34], sizes = [6, 256], strides = [1, 1]} : vector<6x290xf32> to vector<6x256xf32>
    %114 = vector.broadcast %60 : vector<1x256xf32> to vector<6x256xf32>
    %115 = arith.mulf %113, %114 : vector<6x256xf32>
    %116 = vector.extract_strided_slice %61 {offsets = [0, 8], sizes = [6, 1], strides = [1, 1]} : vector<6x9xf32> to vector<6x1xf32>
    %117 = vector.broadcast %116 : vector<6x1xf32> to vector<6x256xf32>
    %118 = arith.mulf %115, %117 : vector<6x256xf32>
    %119 = arith.addf %112, %118 : vector<6x256xf32>
    %c0_16 = arith.constant 0 : index
    %c0_17 = arith.constant 0 : index
    %120 = vector.load %arg6[%c0_16, %c0_17] : memref<6x1xf32, #tpu.memory_space<vmem>>, vector<6x1xf32>
    %121 = vector.broadcast %120 : vector<6x1xf32> to vector<6x256xf32>
    %122 = arith.mulf %119, %121 : vector<6x256xf32>
    %c0_18 = arith.constant 0 : index
    %c0_19 = arith.constant 0 : index
    %123 = vector.load %arg7[%c0_18, %c0_19] : memref<6x1xf32, #tpu.memory_space<vmem>>, vector<6x1xf32>
    %124 = vector.broadcast %123 : vector<6x1xf32> to vector<6x256xf32>
    %125 = arith.addf %122, %124 : vector<6x256xf32>
    %cst_20 = arith.constant 0.000000e+00 : f32
    %126 = vector.broadcast %cst_20 : f32 to vector<6x256xf32>
    %127 = arith.maximumf %125, %126 : vector<6x256xf32>
    %c0_21 = arith.constant 0 : index
    %c0_22 = arith.constant 0 : index
    %c0_23 = arith.constant 0 : index
    %128 = vector.load %arg8[%c0_21, %c0_22, %c0_23] : memref<1x16x256xf32, #tpu.memory_space<vmem>>, vector<1x4x256xf32>
    %129 = vector.shape_cast %128 : vector<1x4x256xf32> to vector<4x256xf32>
    %130 = vector.shape_cast %1 : vector<4x256xf32> to vector<1x4x256xf32>
    tpu.vector_store %arg8[%c0_21, %c0_22, %c0_23], %130 {strides = array<i32>} : memref<1x16x256xf32, #tpu.memory_space<vmem>>, vector<1x4x256xf32>,
    %c0_24 = arith.constant 0 : index
    %c4 = arith.constant 4 : index
    %c0_25 = arith.constant 0 : index
    %131 = vector.load %arg8[%c0_24, %c4, %c0_25] : memref<1x16x256xf32, #tpu.memory_space<vmem>>, vector<1x6x256xf32>
    %132 = vector.shape_cast %131 : vector<1x6x256xf32> to vector<6x256xf32>
    %133 = vector.shape_cast %33 : vector<6x256xf32> to vector<1x6x256xf32>
    tpu.vector_store %arg8[%c0_24, %c4, %c0_25], %133 {strides = array<i32>} : memref<1x16x256xf32, #tpu.memory_space<vmem>>, vector<1x6x256xf32>,
    %c0_26 = arith.constant 0 : index
    %c10 = arith.constant 10 : index
    %c0_27 = arith.constant 0 : index
    %134 = vector.load %arg8[%c0_26, %c10, %c0_27] : memref<1x16x256xf32, #tpu.memory_space<vmem>>, vector<1x6x256xf32>
    %135 = vector.shape_cast %134 : vector<1x6x256xf32> to vector<6x256xf32>
    %136 = vector.shape_cast %127 : vector<6x256xf32> to vector<1x6x256xf32>
    tpu.vector_store %arg8[%c0_26, %c10, %c0_27], %136 {strides = array<i32>} : memref<1x16x256xf32, #tpu.memory_space<vmem>>, vector<1x6x256xf32>,
    return
  }
  func.func @transform_0(%arg0: i32) -> (i32, i32, i32) {
    %c0_i32 = arith.constant 0 : i32
    %c0_i32_0 = arith.constant 0 : i32
    %c0_i32_1 = arith.constant 0 : i32
    return %arg0, %c0_i32, %c0_i32_0 : i32, i32, i32
  }
  func.func @transform_1(%arg0: i32) -> (i32, i32) {
    %c0_i32 = arith.constant 0 : i32
    %c0_i32_0 = arith.constant 0 : i32
    %c0_i32_1 = arith.constant 0 : i32
    return %c0_i32, %c0_i32_0 : i32, i32
  }
  func.func @transform_2(%arg0: i32) -> (i32, i32) {
    %c0_i32 = arith.constant 0 : i32
    %c0_i32_0 = arith.constant 0 : i32
    %c0_i32_1 = arith.constant 0 : i32
    return %c0_i32, %c0_i32_0 : i32, i32
  }
  func.func @transform_3(%arg0: i32) -> (i32, i32) {
    %c0_i32 = arith.constant 0 : i32
    %c0_i32_0 = arith.constant 0 : i32
    %c0_i32_1 = arith.constant 0 : i32
    return %c0_i32, %c0_i32_0 : i32, i32
  }
  func.func @transform_4(%arg0: i32) -> (i32, i32) {
    %c0_i32 = arith.constant 0 : i32
    %c0_i32_0 = arith.constant 0 : i32
    %c0_i32_1 = arith.constant 0 : i32
    return %c0_i32, %c0_i32_0 : i32, i32
  }
  func.func @transform_5(%arg0: i32) -> (i32, i32) {
    %c0_i32 = arith.constant 0 : i32
    %c0_i32_0 = arith.constant 0 : i32
    %c0_i32_1 = arith.constant 0 : i32
    return %c0_i32, %c0_i32_0 : i32, i32
  }
  func.func @transform_6(%arg0: i32) -> (i32, i32) {
    %c0_i32 = arith.constant 0 : i32
    %c0_i32_0 = arith.constant 0 : i32
    %c0_i32_1 = arith.constant 0 : i32
    return %c0_i32, %c0_i32_0 : i32, i32
  }
  func.func @transform_7(%arg0: i32) -> (i32, i32, i32) {
    %c0_i32 = arith.constant 0 : i32
    %c0_i32_0 = arith.constant 0 : i32
    %c0_i32_1 = arith.constant 0 : i32
    return %arg0, %c0_i32, %c0_i32_0 : i32, i32, i32
  }
}

</mosaic_0001>

<llo_original>
// kernel: res_ghost_forward_nchw.1
$region0: #{res_ghost_forward_nchw.1}
  #allocation0 [shape = 'u32[]', space=smem, size = 0x4, offset = 0x4, fixed_abs, tag = 'smem constant byte address 0x4 - core index']
  #allocation1 [shape = 'u32[144,128]{1,0:T(1,128)}', space=vmem, size = 0x12000, scoped, tag = 'internal scratch']
  %s0 = inlined_call_operand.vmem [shape: f32[2,4,256], index: 0, kind: input, shape index: {}]
  %s1 = inlined_call_operand.vmem [shape: f32[6,4], index: 1, kind: input, shape index: {}]
  %s2 = inlined_call_operand.vmem [shape: f32[6,1], index: 2, kind: input, shape index: {}]
  %s3 = inlined_call_operand.vmem [shape: f32[6,1], index: 3, kind: input, shape index: {}]
  %s4 = inlined_call_operand.vmem [shape: f32[6,9], index: 4, kind: input, shape index: {}]
  %s5 = inlined_call_operand.vmem [shape: f32[6,1], index: 5, kind: input, shape index: {}]
  %s6 = inlined_call_operand.vmem [shape: f32[6,1], index: 6, kind: input, shape index: {}]
  %s7 = inlined_call_operand.vmem [shape: f32[2,16,256], index: 7, kind: output, shape index: {}]
  %s8 = sld [smem:[#allocation0]]
  $region61: #{res_ghost_forward_nchw.1} parent=0
    _
  %s10 = ssub.s32 1, %s8
  %s11 = scalar_select 0, %s10, %s8
  loop: start=0, step=1, limit=4
  $region2: #{res_ghost_forward_nchw.1} parent=0 // loop_pre_header
    _
  $region3: #{res_ghost_forward_nchw.1} parent=0 // loop_header
    %s13 = sphi 0, %s17
    %p14 = scmp.ge.s32.totalorder %s13, 4
    %s23 = sphi 0, %s25
    %s26 = sphi 0, %s23
    %s27 = sphi 0, %s26
    %s43 = sphi 0, %s27
    %s47 = sphi 0, %s47
    %s49 = sphi 0, %s47
    %s50 = sphi 0, %s49
    %s64 = sphi 0, %s50
    %s68 = sphi 0, %s68
    %s70 = sphi 0, %s68
    %s71 = sphi 0, %s70
    %s85 = sphi 0, %s71
    %s89 = sphi 0, %s89
    %s91 = sphi 0, %s89
    %s92 = sphi 0, %s91
    %s106 = sphi 0, %s92
    %s110 = sphi 0, %s110
    %s112 = sphi 0, %s110
    %s113 = sphi 0, %s112
    %s127 = sphi 0, %s113
    %s131 = sphi 0, %s131
    %s133 = sphi 0, %s131
    %s134 = sphi 0, %s133
    %s148 = sphi 0, %s134
    %s152 = sphi 0, %s152
    %s154 = sphi 0, %s152
    %s155 = sphi 0, %s154
    %s169 = sphi 0, %s155
    %s175 = sphi 0, %s177
    %s178 = sphi 0, %s175
    %s179 = sphi 0, %s178
    %s195 = sphi 0, %s179
  $region4: #{res_ghost_forward_nchw.1} parent=0 // loop_header_branch
    %16 = sbr.rel (%p14) target = $region8
  $region5: #{res_ghost_forward_nchw.1} parent=0 // loop_body
    %s18 = ssub.s32 %s13, 1
    %s19 = ssub.s32 %s13, 2
    %s20 = sadd.s32 %s13, 1
    %s21 = ssub.s32 %s13, %s20
    %p22 = scmp.eq.s32.totalorder %s21, 0
    %s24 = sadd.s32 %s23, 1
    %s25 = scalar_select %p22, %s23, %s24
    %p28 = pneg %p22
    %p29 = scmp.eq.s32.totalorder %s13, 1
    %p30 = por %p28, %p29
    %p31 = scmp.ne.s32.totalorder %s23, %s26
    %p32 = scmp.eq.s32.totalorder %s13, 0
    %p33 = por %p31, %p32
    %p34 = scmp.ne.s32.totalorder %s23, %s26
    %p35 = scmp.eq.s32.totalorder %s18, 1
    %p36 = por %p34, %p35
    %p37 = scmp.ne.s32.totalorder %s26, %s27
    %p38 = scmp.eq.s32.totalorder %s18, 0
    %p39 = por %p37, %p38
    %p40 = scmp.ne.s32.totalorder %s26, %s27
    %p41 = scmp.eq.s32.totalorder %s19, 1
    %p42 = por %p40, %p41
    %p44 = scmp.ne.s32.totalorder %s27, %s43
    %p45 = scmp.eq.s32.totalorder %s19, 0
    %p46 = por %p44, %p45
    %s48 = sadd.s32 %s47, 1
    %p51 = scmp.eq.s32.totalorder %s13, 1
    %p52 = scmp.ne.s32.totalorder %s47, %s49
    %p53 = scmp.eq.s32.totalorder %s13, 0
    %p54 = por %p52, %p53
    %p55 = scmp.ne.s32.totalorder %s47, %s49
    %p56 = scmp.eq.s32.totalorder %s18, 1
    %p57 = por %p55, %p56
    %p58 = scmp.ne.s32.totalorder %s49, %s50
    %p59 = scmp.eq.s32.totalorder %s18, 0
    %p60 = por %p58, %p59
    %p61 = scmp.ne.s32.totalorder %s49, %s50
    %p62 = scmp.eq.s32.totalorder %s19, 1
    %p63 = por %p61, %p62
    %p65 = scmp.ne.s32.totalorder %s50, %s64
    %p66 = scmp.eq.s32.totalorder %s19, 0
    %p67 = por %p65, %p66
    %s69 = sadd.s32 %s68, 1
    %p72 = scmp.eq.s32.totalorder %s13, 1
    %p73 = scmp.ne.s32.totalorder %s68, %s70
    %p74 = scmp.eq.s32.totalorder %s13, 0
    %p75 = por %p73, %p74
    %p76 = scmp.ne.s32.totalorder %s68, %s70
    %p77 = scmp.eq.s32.totalorder %s18, 1
    %p78 = por %p76, %p77
    %p79 = scmp.ne.s32.totalorder %s70, %s71
    %p80 = scmp.eq.s32.totalorder %s18, 0
    %p81 = por %p79, %p80
    %p82 = scmp.ne.s32.totalorder %s70, %s71
    %p83 = scmp.eq.s32.totalorder %s19, 1
    %p84 = por %p82, %p83
    %p86 = scmp.ne.s32.totalorder %s71, %s85
    %p87 = scmp.eq.s32.totalorder %s19, 0
    %p88 = por %p86, %p87
    %s90 = sadd.s32 %s89, 1
    %p93 = scmp.eq.s32.totalorder %s13, 1
    %p94 = scmp.ne.s32.totalorder %s89, %s91
    %p95 = scmp.eq.s32.totalorder %s13, 0
    %p96 = por %p94, %p95
    %p97 = scmp.ne.s32.totalorder %s89, %s91
    %p98 = scmp.eq.s32.totalorder %s18, 1
    %p99 = por %p97, %p98
    %p100 = scmp.ne.s32.totalorder %s91, %s92
    %p101 = scmp.eq.s32.totalorder %s18, 0
    %p102 = por %p100, %p101
    %p103 = scmp.ne.s32.totalorder %s91, %s92
    %p104 = scmp.eq.s32.totalorder %s19, 1
    %p105 = por %p103, %p104
    %p107 = scmp.ne.s32.totalorder %s92, %s106
    %p108 = scmp.eq.s32.totalorder %s19, 0
    %p109 = por %p107, %p108
    %s111 = sadd.s32 %s110, 1
    %p114 = scmp.eq.s32.totalorder %s13, 1
    %p115 = scmp.ne.s32.totalorder %s110, %s112
    %p116 = scmp.eq.s32.totalorder %s13, 0
    %p117 = por %p115, %p116
    %p118 = scmp.ne.s32.totalorder %s110, %s112
    %p119 = scmp.eq.s32.totalorder %s18, 1
    %p120 = por %p118, %p119
    %p121 = scmp.ne.s32.totalorder %s112, %s113
    %p122 = scmp.eq.s32.totalorder %s18, 0
    %p123 = por %p121, %p122
    %p124 = scmp.ne.s32.totalorder %s112, %s113
    %p125 = scmp.eq.s32.totalorder %s19, 1
    %p126 = por %p124, %p125
    %p128 = scmp.ne.s32.totalorder %s113, %s127
    %p129 = scmp.eq.s32.totalorder %s19, 0
    %p130 = por %p128, %p129
    %s132 = sadd.s32 %s131, 1
    %p135 = scmp.eq.s32.totalorder %s13, 1
    %p136 = scmp.ne.s32.totalorder %s131, %s133
    %p137 = scmp.eq.s32.totalorder %s13, 0
    %p138 = por %p136, %p137
    %p139 = scmp.ne.s32.totalorder %s131, %s133
    %p140 = scmp.eq.s32.totalorder %s18, 1
    %p141 = por %p139, %p140
    %p142 = scmp.ne.s32.totalorder %s133, %s134
    %p143 = scmp.eq.s32.totalorder %s18, 0
    %p144 = por %p142, %p143
    %p145 = scmp.ne.s32.totalorder %s133, %s134
    %p146 = scmp.eq.s32.totalorder %s19, 1
    %p147 = por %p145, %p146
    %p149 = scmp.ne.s32.totalorder %s134, %s148
    %p150 = scmp.eq.s32.totalorder %s19, 0
    %p151 = por %p149, %p150
    %s153 = sadd.s32 %s152, 1
    %p156 = scmp.eq.s32.totalorder %s13, 1
    %p157 = scmp.ne.s32.totalorder %s152, %s154
    %p158 = scmp.eq.s32.totalorder %s13, 0
    %p159 = por %p157, %p158
    %p160 = scmp.ne.s32.totalorder %s152, %s154
    %p161 = scmp.eq.s32.totalorder %s18, 1
    %p162 = por %p160, %p161
    %p163 = scmp.ne.s32.totalorder %s154, %s155
    %p164 = scmp.eq.s32.totalorder %s18, 0
    %p165 = por %p163, %p164
    %p166 = scmp.ne.s32.totalorder %s154, %s155
    %p167 = scmp.eq.s32.totalorder %s19, 1
    %p168 = por %p166, %p167
    %p170 = scmp.ne.s32.totalorder %s155, %s169
    %p171 = scmp.eq.s32.totalorder %s19, 0
    %p172 = por %p170, %p171
    %s173 = ssub.s32 %s13, %s20
    %p174 = scmp.eq.s32.totalorder %s173, 0
    %s176 = sadd.s32 %s175, 1
    %s177 = scalar_select %p174, %s175, %s176
    %p180 = pneg %p174
    %p181 = scmp.eq.s32.totalorder %s13, 1
    %p182 = por %p180, %p181
    %p183 = scmp.ne.s32.totalorder %s175, %s178
    %p184 = scmp.eq.s32.totalorder %s13, 0
    %p185 = por %p183, %p184
    %p186 = scmp.ne.s32.totalorder %s175, %s178
    %p187 = scmp.eq.s32.totalorder %s18, 1
    %p188 = por %p186, %p187
    %p189 = scmp.ne.s32.totalorder %s178, %s179
    %p190 = scmp.eq.s32.totalorder %s18, 0
    %p191 = por %p189, %p190
    %p192 = scmp.ne.s32.totalorder %s178, %s179
    %p193 = scmp.eq.s32.totalorder %s19, 1
    %p194 = por %p192, %p193
    %p196 = scmp.ne.s32.totalorder %s179, %s195
    %p197 = scmp.eq.s32.totalorder %s19, 0
    %p198 = por %p196, %p197
    %p199 = scmp.le.s32.totalorder 1, %s13
    %p200 = scmp.lt.s32.totalorder %s13, 3
    %p201 = pnand %p199, %p200
    %p202 = pneg %p201
    // Predicated region
    $region9: #{res_ghost_forward_nchw.1} parent=5 // pred_check
      _
    $region10: #{res_ghost_forward_nchw.1} parent=5 // pred_check_branch
      %204 = sbr.rel (%p201) target = $region12
    $region11: #{res_ghost_forward_nchw.1} parent=5 // pred_region
      %s205 = ssub.s32 %s13, 1
      // Predicated region
      $region13: #{res_ghost_forward_nchw.1} parent=11 // pred_check
        %p206 = pneg %p60
      $region14: #{res_ghost_forward_nchw.1} parent=11 // pred_check_branch
        %208 = sbr.rel (%p206) target = $region16
      $region15: #{res_ghost_forward_nchw.1} parent=11 // pred_region
        _
      $region16: #{res_ghost_forward_nchw.1} parent=11 // pred_fallthru
        _
      // Predicated region
      $region17: #{res_ghost_forward_nchw.1} parent=11 // pred_check
        %p209 = pneg %p81
      $region18: #{res_ghost_forward_nchw.1} parent=11 // pred_check_branch
        %211 = sbr.rel (%p209) target = $region20
      $region19: #{res_ghost_forward_nchw.1} parent=11 // pred_region
        _
      $region20: #{res_ghost_forward_nchw.1} parent=11 // pred_fallthru
        _
      // Predicated region
      $region21: #{res_ghost_forward_nchw.1} parent=11 // pred_check
        %p212 = pneg %p102
      $region22: #{res_ghost_forward_nchw.1} parent=11 // pred_check_branch
        %214 = sbr.rel (%p212) target = $region24
      $region23: #{res_ghost_forward_nchw.1} parent=11 // pred_region
        _
      $region24: #{res_ghost_forward_nchw.1} parent=11 // pred_fallthru
        _
      // Predicated region
      $region25: #{res_ghost_forward_nchw.1} parent=11 // pred_check
        %p215 = pneg %p123
      $region26: #{res_ghost_forward_nchw.1} parent=11 // pred_check_branch
        %217 = sbr.rel (%p215) target = $region28
      $region27: #{res_ghost_forward_nchw.1} parent=11 // pred_region
        _
      $region28: #{res_ghost_forward_nchw.1} parent=11 // pred_fallthru
        _
      // Predicated region
      $region29: #{res_ghost_forward_nchw.1} parent=11 // pred_check
        %p218 = pneg %p144
      $region30: #{res_ghost_forward_nchw.1} parent=11 // pred_check_branch
        %220 = sbr.rel (%p218) target = $region32
      $region31: #{res_ghost_forward_nchw.1} parent=11 // pred_region
        _
      $region32: #{res_ghost_forward_nchw.1} parent=11 // pred_fallthru
        _
      // Predicated region
      $region33: #{res_ghost_forward_nchw.1} parent=11 // pred_check
        %p221 = pneg %p165
      $region34: #{res_ghost_forward_nchw.1} parent=11 // pred_check_branch
        %223 = sbr.rel (%p221) target = $region36
      $region35: #{res_ghost_forward_nchw.1} parent=11 // pred_region
        _
      $region36: #{res_ghost_forward_nchw.1} parent=11 // pred_fallthru
        _
    $region12: #{res_ghost_forward_nchw.1} parent=5 // pred_fallthru
      _
    %p224 = scmp.lt.s32.totalorder %s13, 2
    // Predicated region
    $region37: #{res_ghost_forward_nchw.1} parent=5 // pred_check
      %p225 = pneg %p224
    $region38: #{res_ghost_forward_nchw.1} parent=5 // pred_check_branch
      %227 = sbr.rel (%p225) target = $region40
    $region39: #{res_ghost_forward_nchw.1} parent=5 // pred_region
      // Predicated region
      $region41: #{res_ghost_forward_nchw.1} parent=39 // pred_check
        %p228 = pneg %p33
      $region42: #{res_ghost_forward_nchw.1} parent=39 // pred_check_branch
        %230 = sbr.rel (%p228) target = $region44
      $region43: #{res_ghost_forward_nchw.1} parent=39 // pred_region
        %p231 = scmp.lt.s32.totalorder %s13, 1
        %s232 = scalar_select %p231, %s13, 1
        %s233 = smul.addr %s232, 2
        %s234 = smul.addr %s233, 4
        %s235 = scalar_lea.vmem %s0, %s234
      $region44: #{res_ghost_forward_nchw.1} parent=39 // pred_fallthru
        _
    $region40: #{res_ghost_forward_nchw.1} parent=5 // pred_fallthru
      _
    %p236 = scmp.le.s32.totalorder 1, %s13
    %p237 = scmp.lt.s32.totalorder %s13, 3
    %p238 = pnand %p236, %p237
    %p239 = pneg %p238
    // Predicated region
    $region45: #{res_ghost_forward_nchw.1} parent=5 // pred_check
      _
    $region46: #{res_ghost_forward_nchw.1} parent=5 // pred_check_branch
      %241 = sbr.rel (%p238) target = $region48
    $region47: #{res_ghost_forward_nchw.1} parent=5 // pred_region
      %s242 = ssub.s32 %s13, 1
      %p243 = scmp.lt.s32.totalorder %s18, 1
      %s244 = scalar_select %p243, %s18, 1
      %s245 = smul.addr %s244, 2
      %s246 = smul.addr %s245, 4
      %s247 = scalar_lea.vmem %s0, %s246
      %p248 = pneg %p39
      %p249 = pneg %p36
      %p250 = pneg %p60
      %p251 = pneg %p57
      %p252 = pneg %p81
      %p253 = pneg %p78
      %p254 = pneg %p102
      %p255 = pneg %p99
      %p256 = pneg %p123
      %p257 = pneg %p120
      %p258 = pneg %p144
      %p259 = pneg %p141
      %p260 = pneg %p165
      %p261 = pneg %p162
      %p262 = pneg %p191
      %p263 = pneg %p188
      %p264 = scmp.lt.s32.totalorder %s18, 1
      %s265 = scalar_select %p264, %s18, 1
      %s266 = smul.addr %s265, 4
      %s267 = smul.addr %s266, 8
      %s268 = scalar_lea.vmem %s7, %s267
      %p269 = scmp.lt.s32.totalorder %s18, 1
      %s270 = scalar_select %p269, %s18, 1
      %s271 = smul.addr %s270, 2
      %s272 = smul.addr %s271, 4
      %s273 = scalar_lea.vmem %s0, %s272
      %p274 = scmp.lt.s32.totalorder %s18, 1
      %s275 = scalar_select %p274, %s18, 1
      %s276 = smul.addr %s275, 4
      %s277 = smul.addr %s276, 8
      %s278 = scalar_lea.vmem %s7, %s277
      %v279 = vld [vmem:[%s273] sm:$0xff]
      %v280 = vld [vmem:[%s1] sm:$0x3f]
      %282 = vset.pattern.permute.xlu0 0
      %283 = vperm.xlu0 %282, %v280
      %v284 = vpop.permute.xlu0 %283
      %v287 = vlaneseq
      %v288 = vshrl.u32 %v287, 7
      %v289 = vsub.s32 0, %v288
      %v290 = vrot.slane %v279, %v289
      %v291 = vlaneseq
      %v292 = vshrl.u32 %v291, 7
      %v293 = vsub.s32 4, %v292
      %v294 = vrot.slane %v279, %v293
      %v297 = vlaneseq
      %v298 = vshrl.u32 %v297, 7
      %v299 = vsub.s32 0, %v298
      %v300 = vrot.slane %v290, %v299
      %v301 = vlaneseq
      %v302 = vshrl.u32 %v301, 7
      %v303 = vsub.s32 0, %v302
      %v304 = vrot.slane %v294, %v303
      %v305 = vmul.f32 %v284, %v300
      %v306 = vmul.f32 %v284, %v304
      %307 = vset.pattern.permute.xlu0 1
      %308 = vperm.xlu0 %307, %v280
      %v309 = vpop.permute.xlu0 %308
      %v311 = vlaneseq
      %v312 = vshrl.u32 %v311, 7
      %v313 = vsub.s32 1, %v312
      %v314 = vrot.slane %v279, %v313
      %v315 = vlaneseq
      %v316 = vshrl.u32 %v315, 7
      %v317 = vsub.s32 5, %v316
      %v318 = vrot.slane %v279, %v317
      %v321 = vlaneseq
      %v322 = vshrl.u32 %v321, 7
      %v323 = vsub.s32 1, %v322
      %v324 = vrot.slane %v314, %v323
      %v325 = vlaneseq
      %v326 = vshrl.u32 %v325, 7
      %v327 = vsub.s32 1, %v326
      %v328 = vrot.slane %v318, %v327
      %v329 = vmul.f32 %v309, %v324
      %v330 = vmul.f32 %v309, %v328
      %v331 = vadd.f32 %v305, %v329
      %v332 = vadd.f32 %v306, %v330
      %333 = vset.pattern.permute.xlu0 2
      %334 = vperm.xlu0 %333, %v280
      %v335 = vpop.permute.xlu0 %334
      %v337 = vlaneseq
      %v338 = vshrl.u32 %v337, 7
      %v339 = vsub.s32 2, %v338
      %v340 = vrot.slane %v279, %v339
      %v341 = vlaneseq
      %v342 = vshrl.u32 %v341, 7
      %v343 = vsub.s32 6, %v342
      %v344 = vrot.slane %v279, %v343
      %v347 = vlaneseq
      %v348 = vshrl.u32 %v347, 7
      %v349 = vsub.s32 2, %v348
      %v350 = vrot.slane %v340, %v349
      %v351 = vlaneseq
      %v352 = vshrl.u32 %v351, 7
      %v353 = vsub.s32 2, %v352
      %v354 = vrot.slane %v344, %v353
      %v355 = vmul.f32 %v335, %v350
      %v356 = vmul.f32 %v335, %v354
      %v357 = vadd.f32 %v331, %v355
      %v358 = vadd.f32 %v332, %v356
      %359 = vset.pattern.permute.xlu0 3
      %360 = vperm.xlu0 %359, %v280
      %v361 = vpop.permute.xlu0 %360
      %v363 = vlaneseq
      %v364 = vshrl.u32 %v363, 7
      %v365 = vsub.s32 3, %v364
      %v366 = vrot.slane %v279, %v365
      %v367 = vlaneseq
      %v368 = vshrl.u32 %v367, 7
      %v369 = vsub.s32 7, %v368
      %v370 = vrot.slane %v279, %v369
      %v373 = vlaneseq
      %v374 = vshrl.u32 %v373, 7
      %v375 = vsub.s32 3, %v374
      %v376 = vrot.slane %v366, %v375
      %v377 = vlaneseq
      %v378 = vshrl.u32 %v377, 7
      %v379 = vsub.s32 3, %v378
      %v380 = vrot.slane %v370, %v379
      %v381 = vmul.f32 %v361, %v376
      %v382 = vmul.f32 %v361, %v380
      %v383 = vadd.f32 %v357, %v381
      %v384 = vadd.f32 %v358, %v382
      %v385 = vld [vmem:[%s2] sm:$0x3f]
      %387 = vset.pattern.permute.xlu0 0
      %388 = vperm.xlu0 %387, %v385
      %v389 = vpop.permute.xlu0 %388
      %v391 = vmul.f32 %v383, %v389
      %v392 = vmul.f32 %v384, %v389
      %v393 = vld [vmem:[%s3] sm:$0x3f]
      %395 = vset.pattern.permute.xlu0 0
      %396 = vperm.xlu0 %395, %v393
      %v397 = vpop.permute.xlu0 %396
      %v399 = vadd.f32 %v391, %v397
      %v400 = vadd.f32 %v392, %v397
      %v401 = vmax.f32 %v399, 0.0
      %v402 = vmax.f32 %v400, 0.0
      %405 = vrot.lane.b32.xlu0 %v401, 17
      %v406 = vpop.permute.xlu0 %405
      %407 = vrot.lane.b32.xlu0 %v402, 17
      %v408 = vpop.permute.xlu0 %407
      %vm409 = vcmask 138240
      %v410 = vsel %vm409, %v406, %v408
      %v414 = vsel %vm409, 0.0, %v406
      %v415 = vsel %vm409, %v408, 0.0
      %v416 = vlaneseq
      %v417 = vand.u32 %v416, 127
      %v418 = vadd.s32 %v417, 128
      %vm419 = vcmp.lt.s32.totalorder %v417, 0
      %v420 = vsub.s32 0, %v417
      %v421 = vsel %vm419, %v420, %v417
      %v422 = vshrl.u32 %v421, 4
      %v423 = vand.u32 %v421, 15
      %v424 = vsub.s32 0, %v423
      %v425 = vsel %vm419, %v424, %v423
      %vm426 = vcmp.lt.s32.totalorder %v418, 0
      %v427 = vsub.s32 0, %v418
      %v428 = vsel %vm426, %v427, %v418
      %v429 = vshrl.u32 %v428, 4
      %v430 = vand.u32 %v428, 15
      %v431 = vsub.s32 0, %v430
      %v432 = vsel %vm426, %v431, %v430
      %vm433 = vcmp.ne.s32.totalorder %v425, 0
      %vm434 = vcmp.ne.s32.totalorder %v432, 0
      %vm435 = vcmp.lt.s32.totalorder %v425, 0
      %vm436 = vcmp.lt.s32.totalorder %v432, 0
      %vm437 = vmand %vm435, %vm433
      %vm438 = vmand %vm436, %vm434
      %v439 = vadd.s32 %v425, 16
      %v440 = vadd.s32 %v432, 16
      %v441 = vsel %vm437, %v439, %v425
      %v442 = vsel %vm438, %v440, %v432
      %vm443 = vcmp.gt.s32.totalorder %v441, 0
      %vm444 = vcmp.gt.s32.totalorder %v442, 0
      %v445 = vsel %vm443, 1, 0
      %v446 = vsel %vm444, 1, 0
      %v447 = vcvt.s32.f32 %v445
      %v448 = vcvt.s32.f32 %v446
      %vm449 = vcmp.lt.s32.totalorder %v441, 15
      %vm450 = vcmp.lt.s32.totalorder %v442, 15
      %v451 = vsel %vm449, 1, 0
      %v452 = vsel %vm450, 1, 0
      %v453 = vcvt.s32.f32 %v451
      %v454 = vcvt.s32.f32 %v452
      %v455 = vld [vmem:[%s4] sm:$0x3f]
      %v456 = vmul.f32 %v414, %v447
      %v457 = vmul.f32 %v410, %v448
      %459 = vset.pattern.permute.xlu0 0
      %460 = vperm.xlu0 %459, %v455
      %v461 = vpop.permute.xlu0 %460
      %v463 = vmul.f32 %v456, %v461
      %v464 = vmul.f32 %v457, %v461
      %v465 = vadd.f32 %v463, 0.0
      %v466 = vadd.f32 %v464, 0.0
      %467 = vset.pattern.permute.xlu0 1
      %468 = vperm.xlu0 %467, %v455
      %v469 = vpop.permute.xlu0 %468
      %v471 = vmul.f32 %v414, %v469
      %v472 = vmul.f32 %v410, %v469
      %v473 = vmul.f32 %v415, %v469
      %477 = vrot.lane.b32.xlu0 %v471, 127
      %v478 = vpop.permute.xlu0 %477
      %479 = vrot.lane.b32.xlu0 %v472, 127
      %v480 = vpop.permute.xlu0 %479
      %481 = vrot.lane.b32.xlu0 %v473, 127
      %v482 = vpop.permute.xlu0 %481
      %vm483 = vcmask 1039360
      %v484 = vsel %vm483, %v478, %v480
      %v485 = vsel %vm483, %v480, %v482
      %v488 = vadd.f32 %v465, %v484
      %v489 = vadd.f32 %v466, %v485
      %492 = vrot.lane.b32.xlu0 %v453, 2
      %v493 = vpop.permute.xlu0 %492
      %494 = vrot.lane.b32.xlu0 %v454, 2
      %v495 = vpop.permute.xlu0 %494
      %vm496 = vcmask 15360
      %v497 = vsel %vm496, %v493, %v495
      %v501 = vmul.f32 %v414, %v493
      %v502 = vmul.f32 %v410, %v497
      %v503 = vmul.f32 %v415, %v495
      %504 = vset.pattern.permute.xlu0 2
      %505 = vperm.xlu0 %504, %v455
      %v506 = vpop.permute.xlu0 %505
      %v508 = vmul.f32 %v501, %v506
      %v509 = vmul.f32 %v502, %v506
      %v510 = vmul.f32 %v503, %v506
      %514 = vrot.lane.b32.xlu0 %v508, 126
      %v515 = vpop.permute.xlu0 %514
      %516 = vrot.lane.b32.xlu0 %v509, 126
      %v517 = vpop.permute.xlu0 %516
      %518 = vrot.lane.b32.xlu0 %v510, 126
      %v519 = vpop.permute.xlu0 %518
      %vm520 = vcmask 1031168
      %v521 = vsel %vm520, %v515, %v517
      %v522 = vsel %vm520, %v517, %v519
      %v525 = vadd.f32 %v488, %v521
      %v526 = vadd.f32 %v489, %v522
      %529 = vrot.lane.b32.xlu0 %v447, 16
      %v530 = vpop.permute.xlu0 %529
      %531 = vrot.lane.b32.xlu0 %v448, 16
      %v532 = vpop.permute.xlu0 %531
      %vm533 = vcmask 130048
      %v534 = vsel %vm533, %v530, %v532
      %v538 = vmul.f32 %v414, %v530
      %v539 = vmul.f32 %v410, %v534
      %v540 = vmul.f32 %v415, %v532
      %541 = vset.pattern.permute.xlu0 3
      %542 = vperm.xlu0 %541, %v455
      %v543 = vpop.permute.xlu0 %542
      %v545 = vmul.f32 %v538, %v543
      %v546 = vmul.f32 %v539, %v543
      %v547 = vmul.f32 %v540, %v543
      %551 = vrot.lane.b32.xlu0 %v545, 112
      %v552 = vpop.permute.xlu0 %551
      %553 = vrot.lane.b32.xlu0 %v546, 112
      %v554 = vpop.permute.xlu0 %553
      %555 = vrot.lane.b32.xlu0 %v547, 112
      %v556 = vpop.permute.xlu0 %555
      %vm557 = vcmask 916480
      %v558 = vsel %vm557, %v552, %v554
      %v559 = vsel %vm557, %v554, %v556
      %v562 = vadd.f32 %v525, %v558
      %v563 = vadd.f32 %v526, %v559
      %564 = vset.pattern.permute.xlu0 4
      %565 = vperm.xlu0 %564, %v455
      %v566 = vpop.permute.xlu0 %565
      %v568 = vmul.f32 %v414, %v566
      %v569 = vmul.f32 %v410, %v566
      %v570 = vmul.f32 %v415, %v566
      %574 = vrot.lane.b32.xlu0 %v568, 111
      %v575 = vpop.permute.xlu0 %574
      %576 = vrot.lane.b32.xlu0 %v569, 111
      %v577 = vpop.permute.xlu0 %576
      %578 = vrot.lane.b32.xlu0 %v570, 111
      %v579 = vpop.permute.xlu0 %578
      %vm580 = vcmask 908288
      %v581 = vsel %vm580, %v575, %v577
      %v582 = vsel %vm580, %v577, %v579
      %v585 = vadd.f32 %v562, %v581
      %v586 = vadd.f32 %v563, %v582
      %587 = vrot.lane.b32.xlu0 %v453, 18
      %v588 = vpop.permute.xlu0 %587
      %589 = vrot.lane.b32.xlu0 %v454, 18
      %v590 = vpop.permute.xlu0 %589
      %vm591 = vcmask 146432
      %v592 = vsel %vm591, %v588, %v590
      %v596 = vmul.f32 %v414, %v588
      %v597 = vmul.f32 %v410, %v592
      %v598 = vmul.f32 %v415, %v590
      %599 = vset.pattern.permute.xlu0 5
      %600 = vperm.xlu0 %599, %v455
      %v601 = vpop.permute.xlu0 %600
      %v603 = vmul.f32 %v596, %v601
      %v604 = vmul.f32 %v597, %v601
      %v605 = vmul.f32 %v598, %v601
      %609 = vrot.lane.b32.xlu0 %v603, 110
      %v610 = vpop.permute.xlu0 %609
      %611 = vrot.lane.b32.xlu0 %v604, 110
      %v612 = vpop.permute.xlu0 %611
      %613 = vrot.lane.b32.xlu0 %v605, 110
      %v614 = vpop.permute.xlu0 %613
      %vm615 = vcmask 900096
      %v616 = vsel %vm615, %v610, %v612
      %v617 = vsel %vm615, %v612, %v614
      %v620 = vadd.f32 %v585, %v616
      %v621 = vadd.f32 %v586, %v617
      %622 = vrot.lane.b32.xlu0 %v447, 32
      %v623 = vpop.permute.xlu0 %622
      %624 = vrot.lane.b32.xlu0 %v448, 32
      %v625 = vpop.permute.xlu0 %624
      %vm626 = vcmask 261120
      %v627 = vsel %vm626, %v623, %v625
      %v631 = vmul.f32 %v414, %v623
      %v632 = vmul.f32 %v410, %v627
      %v633 = vmul.f32 %v415, %v625
      %634 = vset.pattern.permute.xlu0 6
      %635 = vperm.xlu0 %634, %v455
      %v636 = vpop.permute.xlu0 %635
      %v638 = vmul.f32 %v631, %v636
      %v639 = vmul.f32 %v632, %v636
      %v640 = vmul.f32 %v633, %v636
      %644 = vrot.lane.b32.xlu0 %v638, 96
      %v645 = vpop.permute.xlu0 %644
      %646 = vrot.lane.b32.xlu0 %v639, 96
      %v647 = vpop.permute.xlu0 %646
      %648 = vrot.lane.b32.xlu0 %v640, 96
      %v649 = vpop.permute.xlu0 %648
      %vm650 = vcmask 785408
      %v651 = vsel %vm650, %v645, %v647
      %v652 = vsel %vm650, %v647, %v649
      %v655 = vadd.f32 %v620, %v651
      %v656 = vadd.f32 %v621, %v652
      %657 = vset.pattern.permute.xlu0 7
      %658 = vperm.xlu0 %657, %v455
      %v659 = vpop.permute.xlu0 %658
      %v661 = vmul.f32 %v414, %v659
      %v662 = vmul.f32 %v410, %v659
      %v663 = vmul.f32 %v415, %v659
      %667 = vrot.lane.b32.xlu0 %v661, 95
      %v668 = vpop.permute.xlu0 %667
      %669 = vrot.lane.b32.xlu0 %v662, 95
      %v670 = vpop.permute.xlu0 %669
      %671 = vrot.lane.b32.xlu0 %v663, 95
      %v672 = vpop.permute.xlu0 %671
      %vm673 = vcmask 777216
      %v674 = vsel %vm673, %v668, %v670
      %v675 = vsel %vm673, %v670, %v672
      %v678 = vadd.f32 %v655, %v674
      %v679 = vadd.f32 %v656, %v675
      %680 = vrot.lane.b32.xlu0 %v453, 34
      %v681 = vpop.permute.xlu0 %680
      %682 = vrot.lane.b32.xlu0 %v454, 34
      %v683 = vpop.permute.xlu0 %682
      %vm684 = vcmask 277504
      %v685 = vsel %vm684, %v681, %v683
      %v689 = vmul.f32 %v414, %v681
      %v690 = vmul.f32 %v410, %v685
      %v691 = vmul.f32 %v415, %v683
      %692 = vset.pattern.permute.xlu0 8
      %693 = vperm.xlu0 %692, %v455
      %v694 = vpop.permute.xlu0 %693
      %v696 = vmul.f32 %v689, %v694
      %v697 = vmul.f32 %v690, %v694
      %v698 = vmul.f32 %v691, %v694
      %702 = vrot.lane.b32.xlu0 %v696, 94
      %v703 = vpop.permute.xlu0 %702
      %704 = vrot.lane.b32.xlu0 %v697, 94
      %v705 = vpop.permute.xlu0 %704
      %706 = vrot.lane.b32.xlu0 %v698, 94
      %v707 = vpop.permute.xlu0 %706
      %vm708 = vcmask 769024
      %v709 = vsel %vm708, %v703, %v705
      %v710 = vsel %vm708, %v705, %v707
      %v713 = vadd.f32 %v678, %v709
      %v714 = vadd.f32 %v679, %v710
      %v715 = vld [vmem:[%s5] sm:$0x3f]
      %717 = vset.pattern.permute.xlu0 0
      %718 = vperm.xlu0 %717, %v715
      %v719 = vpop.permute.xlu0 %718
      %v721 = vmul.f32 %v713, %v719
      %v722 = vmul.f32 %v714, %v719
      %v723 = vld [vmem:[%s6] sm:$0x3f]
      %725 = vset.pattern.permute.xlu0 0
      %726 = vperm.xlu0 %725, %v723
      %v727 = vpop.permute.xlu0 %726
      %v729 = vadd.f32 %v721, %v727
      %v730 = vadd.f32 %v722, %v727
      %v731 = vmax.f32 %v729, 0.0
      %v732 = vmax.f32 %v730, 0.0
      %v733 = vcombine.high %v279, %v279
      %735 = vst [vmem:[%s278] sm:$0xf] %v279
      %736 = vst [vmem:[%s278 + $0x8] sm:$0xf] %v733
      %v737 = vrot.slane %v401, 4
      %v738 = vrot.slane %v402, 4
      %741 = vst [vmem:[%s278] sm:$0xf0] %v737
      %742 = vst [vmem:[%s278 + $0x8] sm:$0xf0] %v738
      %743 = vst [vmem:[%s278 + $0x10] sm:$0x3] %v737
      %744 = vst [vmem:[%s278 + $0x18] sm:$0x3] %v738
      %v747 = vrot.slane %v731, 6
      %v748 = vrot.slane %v732, 6
      %751 = vst [vmem:[%s278 + $0x10] sm:$0xfc] %v747
      %752 = vst [vmem:[%s278 + $0x18] sm:$0xfc] %v748
      %p753 = scmp.lt.s32.totalorder %s18, 1
      %s754 = scalar_select %p753, %s18, 1
      %s755 = smul.addr %s754, 4
      %s756 = smul.addr %s755, 8
      %s757 = scalar_lea.vmem %s7, %s756
      // Predicated region
      $region49: #{res_ghost_forward_nchw.1} parent=47 // pred_check
        %p758 = pneg %p188
      $region50: #{res_ghost_forward_nchw.1} parent=47 // pred_check_branch
        %760 = sbr.rel (%p758) target = $region52
      $region51: #{res_ghost_forward_nchw.1} parent=47 // pred_region
        _
      $region52: #{res_ghost_forward_nchw.1} parent=47 // pred_fallthru
        _
    $region48: #{res_ghost_forward_nchw.1} parent=5 // pred_fallthru
      _
    %p761 = scmp.le.s32.totalorder 2, %s13
    // Predicated region
    $region53: #{res_ghost_forward_nchw.1} parent=5 // pred_check
      %p762 = pneg %p761
    $region54: #{res_ghost_forward_nchw.1} parent=5 // pred_check_branch
      %764 = sbr.rel (%p762) target = $region56
    $region55: #{res_ghost_forward_nchw.1} parent=5 // pred_region
      %s765 = ssub.s32 %s13, 2
      // Predicated region
      $region57: #{res_ghost_forward_nchw.1} parent=55 // pred_check
        %p766 = pneg %p194
      $region58: #{res_ghost_forward_nchw.1} parent=55 // pred_check_branch
        %768 = sbr.rel (%p766) target = $region60
      $region59: #{res_ghost_forward_nchw.1} parent=55 // pred_region
        %p769 = scmp.lt.s32.totalorder %s19, 1
        %s770 = scalar_select %p769, %s19, 1
        %s771 = smul.addr %s770, 4
        %s772 = smul.addr %s771, 8
        %s773 = scalar_lea.vmem %s7, %s772
      $region60: #{res_ghost_forward_nchw.1} parent=55 // pred_fallthru
        _
    $region56: #{res_ghost_forward_nchw.1} parent=5 // pred_fallthru
      _
  $region6: #{res_ghost_forward_nchw.1} parent=0 // loop_footer
    %s17 = sadd.s32 1, %s13
  $region7: #{res_ghost_forward_nchw.1} parent=0 // loop_footer_branch
    %12 = sbr.rel target = $region3
  $region8: #{res_ghost_forward_nchw.1} parent=0 // loop_exit
    _

</llo_original>
